<compile_context>
chip_gen: v7x
topology: tpu7x:2x2x1
jax: 0.10.0
libtpu: 0.0.40
codegen_flags: <defaults>
</compile_context>

<pallas_src>
import jax
import jax.numpy as jnp
from jax.experimental import pallas as pl
from jax.experimental.pallas import tpu as pltpu


def _round_up(x, m):
    return (x + m - 1) // m * m


def _largest_divisor_leq(n, cap):
    """Largest divisor of n that is <= cap (n, cap: positive python ints)."""
    cap = max(1, min(cap, n))
    for d in range(cap, 0, -1):
        if n % d == 0:
            return d
    return 1


def _node_score_kernel(x_ref, v1_ref, v2_ref, sa_ref, sb_ref):
    """Per-node collapsed scores: sa = x·v1, sb = x·v2.

    x_ref        : (TN, D_pad) node-embedding tile (native dtype)
    v1_ref/v2_ref: (1, D_pad)  collapsed weight rows (f32, resident)
    sa_ref/sb_ref: (TN, 1)     per-node score columns (f32)
    """
    x = x_ref[...].astype(jnp.float32)                      # (TN, D_pad)
    # VPU multiply + lane reduce; bandwidth-bound so MXU would not be faster.
    sa_ref[...] = jnp.sum(x * v1_ref[...], axis=1, keepdims=True)
    sb_ref[...] = jnp.sum(x * v2_ref[...], axis=1, keepdims=True)


def _edge_prob_kernel(ga_ref, gb_ref, c_ref, o_ref):
    """clamp(sigmoid(ga + gb + c)) over a lane-dense edge tile.

    ga_ref, gb_ref : (1, TE) gathered per-node scores for edge endpoints
    c_ref          : (1, 1)  collapsed scalar bias (SMEM)
    o_ref          : (1, TE) output probabilities (lane-dense)
    """
    logits = ga_ref[...] + gb_ref[...] + c_ref[0, 0]
    p = jax.nn.sigmoid(logits)
    # Matches torch.clamp(sigmoid(x), 1e-8, 1-1e-8).  Note 1 - 1e-8 rounds to
    # exactly 1.0 in float32, same as the float32 PyTorch reference.
    o_ref[...] = jnp.clip(p, 1e-8, 1.0 - 1e-8)


def link_prediction_forward(inputs, pos_edge_index, neg_edge_index, params,
                            *, vmem_tile_budget_bytes=4 << 20):
    """JAX/Pallas equivalent of LinkPredictionOutputModule.forward."""
    wa, ba, w, b = params["wa"], params["ba"], params["w"], params["b"]
    N, D = inputs.shape

    # ---- collapse linear_a + linear (exact; no nonlinearity in between) ----
    w1 = w[0, :D].astype(jnp.float32)
    w2 = w[0, D:].astype(jnp.float32)
    wa32 = wa.astype(jnp.float32)
    ba32 = ba.astype(jnp.float32)
    v1 = wa32.T @ w1                                         # (D,)
    v2 = wa32.T @ w2                                         # (D,)
    c = jnp.dot(ba32, w1) + jnp.dot(ba32, w2) + b.astype(jnp.float32)[0]

    # ---------------- Pallas kernel 1: per-node scores ----------------------
    d_pad = _round_up(D, 128)
    n_pad = _round_up(max(N, 1), 8)
    itemsize = inputs.dtype.itemsize

    # Double-buffered (TN, D_pad) input tile within the VMEM budget
    # (plus in-kernel f32 temporaries stays well under the 32 MiB scoped cap).
    tn_cap = vmem_tile_budget_bytes // (2 * d_pad * itemsize)
    tn_cap = max(8, min(4096, (tn_cap // 8) * 8))
    if n_pad <= tn_cap:
        tn = n_pad
    else:
        tn = tn_cap
        n_pad = _round_up(n_pad, tn)

    x_pad = jnp.pad(inputs, ((0, n_pad - N), (0, d_pad - D)))
    v1_row = jnp.pad(v1, (0, d_pad - D)).reshape(1, d_pad)
    v2_row = jnp.pad(v2, (0, d_pad - D)).reshape(1, d_pad)

    sa, sb = pl.pallas_call(
        _node_score_kernel,
        out_shape=(jax.ShapeDtypeStruct((n_pad, 1), jnp.float32),
                   jax.ShapeDtypeStruct((n_pad, 1), jnp.float32)),
        grid=(n_pad // tn,),
        in_specs=[
            pl.BlockSpec((tn, d_pad), lambda i: (i, 0)),     # node tile
            pl.BlockSpec((1, d_pad), lambda i: (0, 0)),      # v1 (resident)
            pl.BlockSpec((1, d_pad), lambda i: (0, 0)),      # v2 (resident)
        ],
        out_specs=[
            pl.BlockSpec((tn, 1), lambda i: (i, 0)),
            pl.BlockSpec((tn, 1), lambda i: (i, 0)),
        ],
        compiler_params=pltpu.CompilerParams(
            dimension_semantics=("parallel",),
            vmem_limit_bytes=32 << 20),
    )(x_pad, v1_row, v2_row)

    # ---------------- per-edge scalar gather (XLA glue, 4 B/edge each) ------
    # TODO(synk): fuse this scalar gather into the edge kernel (VMEM-resident
    # score table + in-kernel dynamic gather) to remove the XLA gather op.
    total = jnp.concatenate([pos_edge_index, neg_edge_index], axis=-1)  # (2,E)
    E = total.shape[1]
    e_pad = _round_up(max(E, 1), 128)

    idx_a = jnp.pad(total[0].astype(jnp.int32), (0, e_pad - E))
    idx_b = jnp.pad(total[1].astype(jnp.int32), (0, e_pad - E))

    ga = jnp.take(sa[:, 0], idx_a).reshape(1, e_pad)
    gb = jnp.take(sb[:, 0], idx_b).reshape(1, e_pad)
    c_arr = jnp.asarray(c, jnp.float32).reshape(1, 1)

    # ---------------- Pallas kernel 2: per-edge sigmoid/clamp ---------------
    # Edge tile: a multiple of 128 lanes that divides e_pad exactly (no wasted
    # streaming), capped at 32768 lanes (~0.4 MiB per f32 row tile).
    m_blocks = e_pad // 128
    te = 128 * _largest_divisor_leq(m_blocks, 256)

    out = pl.pallas_call(
        _edge_prob_kernel,
        out_shape=jax.ShapeDtypeStruct((1, e_pad), jnp.float32),
        grid=(e_pad // te,),
        in_specs=[
            pl.BlockSpec((1, te), lambda i: (0, i)),             # sa[idx_a]
            pl.BlockSpec((1, te), lambda i: (0, i)),             # sb[idx_b]
            pl.BlockSpec(memory_space=pltpu.MemorySpace.SMEM),   # scalar c
        ],
        out_specs=pl.BlockSpec((1, te), lambda i: (0, i)),
        compiler_params=pltpu.CompilerParams(
            dimension_semantics=("parallel",),
            vmem_limit_bytes=32 << 20),
    )(ga, gb, c_arr)

    return out[0, :E].reshape(E, 1)


if __name__ == "__main__":
    key = jax.random.PRNGKey(0)
    N, D = 16, 32            # num_nodes, node_embedding_dim
    E_pos, E_neg = 8, 8      # positive / negative edges

    k1, k2, k3, k4, k5, k6, k7 = jax.random.split(key, 7)

    inputs = jax.random.normal(k1, (N, D), dtype=jnp.float32)
    pos_edge_index = jax.random.randint(k2, (2, E_pos), 0, N, dtype=jnp.int32)
    neg_edge_index = jax.random.randint(k3, (2, E_neg), 0, N, dtype=jnp.int32)

    # Deterministic parameter init mimicking nn.Linear's uniform(-1/sqrt(fan_in), ...)
    bound_a = 1.0 / float(D) ** 0.5
    bound_o = 1.0 / float(2 * D) ** 0.5
    params = {
        "wa": jax.random.uniform(k4, (D, D), jnp.float32, -bound_a, bound_a),     # linear_a.weight
        "ba": jax.random.uniform(k5, (D,), jnp.float32, -bound_a, bound_a),       # linear_a.bias
        "w": jax.random.uniform(k6, (1, 2 * D), jnp.float32, -bound_o, bound_o),  # linear.weight
        "b": jax.random.uniform(k7, (1,), jnp.float32, -bound_o, bound_o),        # linear.bias
    }

    out = link_prediction_forward(inputs, pos_edge_index, neg_edge_index, params)
    out = jax.block_until_ready(out)
    assert out.shape == (E_pos + E_neg, 1), out.shape

    # Pure-JAX reference of the PyTorch forward.
    total = jnp.concatenate([pos_edge_index, neg_edge_index], axis=-1)
    na = inputs[total[0]] @ params["wa"].T + params["ba"]
    nb = inputs[total[1]] @ params["wa"].T + params["ba"]
    ref = jnp.clip(
        jax.nn.sigmoid(jnp.concatenate([na, nb], axis=1) @ params["w"].T + params["b"]),
        1e-8,
        1.0 - 1e-8,
    )
    assert jnp.allclose(out, ref, atol=1e-5, rtol=1e-5), (out, ref)

    print("KERNEL_OK")
</pallas_src>

<mosaic_0001>
module attributes {stable_mosaic.version = 11 : i64} {
  func.func @_node_score_kernel(%arg0: i32, %arg1: memref<16x128xf32, #tpu.memory_space<vmem>>, %arg2: memref<1x128xf32, #tpu.memory_space<vmem>>, %arg3: memref<1x128xf32, #tpu.memory_space<vmem>>, %arg4: memref<16x1xf32, #tpu.memory_space<vmem>>, %arg5: memref<16x1xf32, #tpu.memory_space<vmem>>) attributes {dimension_semantics = [#tpu.dimension_semantics<parallel>], iteration_bounds = array<i64: 1>, scalar_prefetch = 0 : i64, scratch_operands = 0 : i64, tpu.core_type = #tpu.core_type<tc>, window_params = [{transform_indices = @transform_0, window_bounds = array<i64: 16, 128>}, {pipeline_mode = #tpu.pipeline_mode<synchronous>, transform_indices = @transform_1, window_bounds = array<i64: 1, 128>}, {pipeline_mode = #tpu.pipeline_mode<synchronous>, transform_indices = @transform_2, window_bounds = array<i64: 1, 128>}, {transform_indices = @transform_3, window_bounds = array<i64: 16, 1>}, {transform_indices = @transform_4, window_bounds = array<i64: 16, 1>}]} {
    %c0 = arith.constant 0 : index
    %c0_0 = arith.constant 0 : index
    %0 = vector.load %arg1[%c0, %c0_0] : memref<16x128xf32, #tpu.memory_space<vmem>>, vector<16x128xf32>
    %c0_1 = arith.constant 0 : index
    %c0_2 = arith.constant 0 : index
    %1 = vector.load %arg2[%c0_1, %c0_2] : memref<1x128xf32, #tpu.memory_space<vmem>>, vector<1x128xf32>
    %2 = vector.broadcast %1 : vector<1x128xf32> to vector<16x128xf32>
    %3 = arith.mulf %0, %2 : vector<16x128xf32>
    %cst = arith.constant dense<0.000000e+00> : vector<16xf32>
    %4 = vector.multi_reduction <add>, %3, %cst [1] : vector<16x128xf32> to vector<16xf32>
    %5 = vector.shape_cast %4 : vector<16xf32> to vector<16x1xf32>
    %c0_3 = arith.constant 0 : index
    %c0_4 = arith.constant 0 : index
    %6 = vector.load %arg4[%c0_3, %c0_4] : memref<16x1xf32, #tpu.memory_space<vmem>>, vector<16x1xf32>
    tpu.vector_store %arg4[%c0_3, %c0_4], %5 {strides = array<i32>} : memref<16x1xf32, #tpu.memory_space<vmem>>, vector<16x1xf32>,
    %c0_5 = arith.constant 0 : index
    %c0_6 = arith.constant 0 : index
    %7 = vector.load %arg3[%c0_5, %c0_6] : memref<1x128xf32, #tpu.memory_space<vmem>>, vector<1x128xf32>
    %8 = vector.broadcast %7 : vector<1x128xf32> to vector<16x128xf32>
    %9 = arith.mulf %0, %8 : vector<16x128xf32>
    %cst_7 = arith.constant dense<0.000000e+00> : vector<16xf32>
    %10 = vector.multi_reduction <add>, %9, %cst_7 [1] : vector<16x128xf32> to vector<16xf32>
    %11 = vector.shape_cast %10 : vector<16xf32> to vector<16x1xf32>
    %c0_8 = arith.constant 0 : index
    %c0_9 = arith.constant 0 : index
    %12 = vector.load %arg5[%c0_8, %c0_9] : memref<16x1xf32, #tpu.memory_space<vmem>>, vector<16x1xf32>
    tpu.vector_store %arg5[%c0_8, %c0_9], %11 {strides = array<i32>} : memref<16x1xf32, #tpu.memory_space<vmem>>, vector<16x1xf32>,
    return
  }
  func.func @transform_0(%arg0: i32) -> (i32, i32) {
    %c0_i32 = arith.constant 0 : i32
    %c0_i32_0 = arith.constant 0 : i32
    return %arg0, %c0_i32 : i32, i32
  }
  func.func @transform_1(%arg0: i32) -> (i32, i32) {
    %c0_i32 = arith.constant 0 : i32
    %c0_i32_0 = arith.constant 0 : i32
    %c0_i32_1 = arith.constant 0 : i32
    return %c0_i32, %c0_i32_0 : i32, i32
  }
  func.func @transform_2(%arg0: i32) -> (i32, i32) {
    %c0_i32 = arith.constant 0 : i32
    %c0_i32_0 = arith.constant 0 : i32
    %c0_i32_1 = arith.constant 0 : i32
    return %c0_i32, %c0_i32_0 : i32, i32
  }
  func.func @transform_3(%arg0: i32) -> (i32, i32) {
    %c0_i32 = arith.constant 0 : i32
    %c0_i32_0 = arith.constant 0 : i32
    return %arg0, %c0_i32 : i32, i32
  }
  func.func @transform_4(%arg0: i32) -> (i32, i32) {
    %c0_i32 = arith.constant 0 : i32
    %c0_i32_0 = arith.constant 0 : i32
    return %arg0, %c0_i32 : i32, i32
  }
}

</mosaic_0001>

<llo_original>
// kernel: tpu_custom_call.1
$region0: #{tpu_custom_call.1}
  #allocation0 [shape = 'u32[]', space=smem, size = 0x4, offset = 0x4, fixed_abs, tag = 'smem constant byte address 0x4 - core index']
  #allocation1 [shape = 'u32[144,128]{1,0:T(1,128)}', space=vmem, size = 0x12000, scoped, tag = 'internal scratch']
  %s0 = inlined_call_operand.hbm [shape: f32[16,128], index: 0, kind: input, shape index: {}]
  %s1 = inlined_call_operand.vmem [shape: f32[1,128], index: 1, kind: input, shape index: {}]
  %s2 = inlined_call_operand.vmem [shape: f32[1,128], index: 2, kind: input, shape index: {}]
  %s3 = inlined_call_operand.vmem [shape: f32[16,1], index: 3, kind: output, shape index: {0}]
  %s4 = inlined_call_operand.vmem [shape: f32[16,1], index: 4, kind: output, shape index: {1}]
  %5 = xla_tuple %s3, %s4
  %s6 = sld [smem:[#allocation0]]
  $region34: #{tpu_custom_call.1} parent=0
    _
  %s8 = ssub.s32 1, %s6
  %s9 = scalar_select 0, %s8, %s6
  $region1: #{tpu_custom_call.1} parent=0
    #allocation2 [shape = 'u8[8192]{0}', space=vmem, size = 0x2000, scoped, tag = 'input window, operand 0, single buffered']
    #allocation3 [shape = 's32[1]{0}', space=sflag, size = 0x4, scoped, tag = 'scoped memory for tpu_custom_call.1']
    %10 = vsyncpa [#allocation3], 0
    // Predicated region
    $region2: #{tpu_custom_call.1} parent=1 // pred_check
      _
    $region3: #{tpu_custom_call.1} parent=1 // pred_check_branch
      %12 = sbr.rel (0) target = $region5
    $region4: #{tpu_custom_call.1} parent=1 // pred_region
      %s14 = ssub.s32 256, 256
      %15 = vsyncadd [#allocation3], %s14
      %s16 = sshll.u32 [#allocation2], 4
      %s17 = int_to_ptr.vmem [resolvable:$true] %s16
      %22 = dma.hbm_to_vmem [thread:$0]  %s0, 256, %s17, [#allocation3], 128, 128, 8
    $region5: #{tpu_custom_call.1} parent=1 // pred_fallthru
      _
    // Predicated region
    $region6: #{tpu_custom_call.1} parent=1 // pred_check
      _
    $region7: #{tpu_custom_call.1} parent=1 // pred_check_branch
      %24 = sbr.rel (0) target = $region9
    $region8: #{tpu_custom_call.1} parent=1 // pred_region
      _
    $region9: #{tpu_custom_call.1} parent=1 // pred_fallthru
      _
    // Predicated region
    $region10: #{tpu_custom_call.1} parent=1 // pred_check
      _
    $region11: #{tpu_custom_call.1} parent=1 // pred_check_branch
      %26 = sbr.rel (0) target = $region13
    $region12: #{tpu_custom_call.1} parent=1 // pred_region
      _
    $region13: #{tpu_custom_call.1} parent=1 // pred_fallthru
      _
    // Predicated region
    $region14: #{tpu_custom_call.1} parent=1 // pred_check
      _
    $region15: #{tpu_custom_call.1} parent=1 // pred_check_branch
      %28 = sbr.rel (0) target = $region17
    $region16: #{tpu_custom_call.1} parent=1 // pred_region
      %29 = dma.done [#allocation3], 256
    $region17: #{tpu_custom_call.1} parent=1 // pred_fallthru
      _
    %v30 = vld [vmem:[#allocation2] sm:$0xff]
    %v31 = vld [vmem:[#allocation2 + $0x8] sm:$0xff]
    %v32 = vld [vmem:[%s1] sm:$0x1]
    %v34 = vlaneseq
    %v35 = vshrl.u32 %v34, 7
    %v36 = vsub.s32 0, %v35
    %v37 = vrot.slane %v32, %v36
    %v39 = vmul.f32 %v30, %v37
    %v40 = vmul.f32 %v31, %v37
    %41 = vadd.xlane.f32.xlu0 %v39
    %v42 = vpop.xlane.xlu0 %41
    %43 = vadd.xlane.f32.xlu0 %v40
    %v44 = vpop.xlane.xlu0 %43
    %vm45 = vcmask 7168
    %46 = vst.msk [vmem:[%s3] sm:$0xff] %vm45, %v42
    %47 = vst.msk [vmem:[%s3 + $0x8] sm:$0xff] %vm45, %v44
    %v48 = vld [vmem:[%s2] sm:$0x1]
    %v50 = vlaneseq
    %v51 = vshrl.u32 %v50, 7
    %v52 = vsub.s32 0, %v51
    %v53 = vrot.slane %v48, %v52
    %v55 = vmul.f32 %v30, %v53
    %v56 = vmul.f32 %v31, %v53
    %57 = vadd.xlane.f32.xlu0 %v55
    %v58 = vpop.xlane.xlu0 %57
    %59 = vadd.xlane.f32.xlu0 %v56
    %v60 = vpop.xlane.xlu0 %59
    %61 = vst.msk [vmem:[%s4] sm:$0xff] %vm45, %v58
    %62 = vst.msk [vmem:[%s4 + $0x8] sm:$0xff] %vm45, %v60
    // Predicated region
    $region18: #{tpu_custom_call.1} parent=1 // pred_check
      _
    $region19: #{tpu_custom_call.1} parent=1 // pred_check_branch
      %64 = sbr.rel (0) target = $region21
    $region20: #{tpu_custom_call.1} parent=1 // pred_region
      _
    $region21: #{tpu_custom_call.1} parent=1 // pred_fallthru
      _
    // Predicated region
    $region22: #{tpu_custom_call.1} parent=1 // pred_check
      _
    $region23: #{tpu_custom_call.1} parent=1 // pred_check_branch
      %66 = sbr.rel (0) target = $region25
    $region24: #{tpu_custom_call.1} parent=1 // pred_region
      _
    $region25: #{tpu_custom_call.1} parent=1 // pred_fallthru
      _
    // Predicated region
    $region26: #{tpu_custom_call.1} parent=1 // pred_check
      _
    $region27: #{tpu_custom_call.1} parent=1 // pred_check_branch
      %68 = sbr.rel (0) target = $region29
    $region28: #{tpu_custom_call.1} parent=1 // pred_region
      _
    $region29: #{tpu_custom_call.1} parent=1 // pred_fallthru
      _
    // Predicated region
    $region30: #{tpu_custom_call.1} parent=1 // pred_check
      _
    $region31: #{tpu_custom_call.1} parent=1 // pred_check_branch
      %70 = sbr.rel (0) target = $region33
    $region32: #{tpu_custom_call.1} parent=1 // pred_region
      _
    $region33: #{tpu_custom_call.1} parent=1 // pred_fallthru
      _
    %71 = vsyncpa [#allocation3], 1

</llo_original>
